<compile_context>
chip_gen: v7x
topology: tpu7x:2x2x1
jax: 0.10.0
libtpu: 0.0.40
codegen_flags: <defaults>
</compile_context>

<pallas_src>
import math

import jax
import jax.numpy as jnp
from jax.experimental import pallas as pl
from jax.experimental.pallas import tpu as pltpu

_EPS = 1e-10
# torch: int(log(finfo(float32).tiny).item()) / 2.0 == int(-87.336...) / 2 == -43.5
_MIN_VAL = int(math.log(float(jnp.finfo(jnp.float32).tiny))) / 2.0
_LOG_2PI = math.log(2.0 * math.pi)


def _gmm_loss_kernel(coef_ref, mu_ref, lnv_ref, gt_ref, out_ref):
    # Upcast at load time: bf16/f16 callers keep the narrow HBM->VMEM DMA and
    # compute runs in f32 (required on v5e's VPU/EUP, cheap everywhere).
    coef = coef_ref[...].astype(jnp.float32)      # [B, K]
    mu = mu_ref[...].astype(jnp.float32)          # [B, K, 2T]  (x,y interleaved on lanes)
    lnv = lnv_ref[...].astype(jnp.float32)        # [B, K, 2T]
    gt = gt_ref[...].astype(jnp.float32)          # [B, 2T]

    two_t = mu.shape[-1]

    # Per-channel squared difference; ground truth broadcasts over the K
    # (sublane) axis — torch's unsqueeze(1).
    d = gt[:, None, :] - mu                       # [B, K, 2T]
    dsq = d * d

    # displacement^2(t) = dx_t^2 + dy_t^2 must reach BOTH the x and y variance
    # channels.  Lanes are interleaved (x_t at even lanes, y_t at odd), so each
    # lane adds its partner's value: even lanes take the right neighbour, odd
    # lanes the left.  Static rolls run on the XLU slot (free vs the VPU chain).
    nbr_right = pltpu.roll(dsq, two_t - 1, 2)     # value at lane j+1
    nbr_left = pltpu.roll(dsq, 1, 2)              # value at lane j-1
    lane = jax.lax.broadcasted_iota(jnp.int32, dsq.shape, 2)
    partner = jnp.where((lane & 1) == 0, nbr_right, nbr_left)
    disp_sq = dsq + partner                       # [B, K, 2T]

    # part_a + part_b with the clipped log-variance used directly:
    #   disp/(2*var) + log(sqrt(2*pi*var)) = 0.5*(disp*exp(-lnv) + log(2*pi) + lnv)
    # -> one exp per element; no sqrt / log / divide on the big arrays.
    lnv = jnp.clip(lnv, _MIN_VAL, -_MIN_VAL)
    part = 0.5 * (disp_sq * jnp.exp(-lnv) + (_LOG_2PI + lnv))     # [B, K, 2T]

    # Time and xy now share the lane axis -> ONE last-axis reduction
    # (torch: sum over dim=2 plus the xy fold via the [B,K,1] coef broadcast).
    gaussian = jnp.sum(part, axis=2)              # [B, K]

    # Exact softmax over components (torch dim=1); log-softmax via log-sum-exp
    # so the +1e-10 guard is unnecessary and sm == exp(log_sm).
    shifted = coef - jnp.max(coef, axis=1, keepdims=True)         # [B, K]
    e = jnp.exp(shifted)
    denom = jnp.sum(e, axis=1, keepdims=True)                     # [B, 1]
    sm = e / denom                                                # exact
    log_sm = shifted - jnp.log(denom)

    # loss = sum(sm * gaussian) + mean_b(sum_k sm * log sm) as ONE reduction.
    inv_b = 1.0 / coef.shape[0]
    total = jnp.sum(sm * (gaussian + inv_b * log_sm))

    # Keep the scalar as a (1,1) VMEM block (proven lowering; the single padded
    # writeback tile is off the critical path at these shapes).
    out_ref[...] = total * jnp.ones((1, 1), jnp.float32)


@jax.jit
def gmm_trajectory_loss(coef, mu, ln_var, ground_truth):
    """predictions = (coef [B,K], mu [B,K,T,2], ln_var [B,K,T,2]); gt [B,T,2]."""
    B, K, T, _ = mu.shape
    # Contiguous (zero-copy) reshapes only — no transpose/copy kernels emitted.
    mu2 = mu.reshape(B, K, 2 * T)
    lnv2 = ln_var.reshape(B, K, 2 * T)
    gt2 = ground_truth.reshape(B, 2 * T)

    vmem = pl.BlockSpec(memory_space=pltpu.MemorySpace.VMEM)
    out = pl.pallas_call(
        _gmm_loss_kernel,
        out_shape=jax.ShapeDtypeStruct((1, 1), jnp.float32),
        in_specs=[vmem] * 4,
        out_specs=vmem,
    )(coef, mu2, lnv2, gt2)
    return out[0, 0]


def _reference_loss(coef, mu, ln_var, gt):
    """Plain-JAX reference mirroring the PyTorch forward exactly."""
    x_gt = gt[..., 0][:, None, :]
    y_gt = gt[..., 1][:, None, :]
    x_pred = mu[..., 0]
    y_pred = mu[..., 1]
    disp = ((x_gt - x_pred) ** 2 + (y_gt - y_pred) ** 2)[..., None]   # [B,K,T,1]
    lnv = jnp.clip(ln_var, _MIN_VAL, -_MIN_VAL)
    var = jnp.exp(lnv)
    c = jax.nn.softmax(coef, axis=1)[..., None]                        # [B,K,1]
    part_a = disp / (2.0 * var)
    part_b = jnp.log(jnp.sqrt(2.0 * math.pi * var))
    gaussian = jnp.sum(part_a + part_b, axis=2)                        # [B,K,2]
    gmm_loss = jnp.sum(c * gaussian)
    ent_per_mode = -c * jnp.log(c + _EPS)
    ent_per_item = jnp.sum(ent_per_mode, axis=1)                       # [B,1]
    ent_loss = jnp.mean(-ent_per_item)
    return gmm_loss + ent_loss


if __name__ == "__main__":
    B, K, T = 2, 4, 8  # batch, GMM components, trajectory length
    key = jax.random.PRNGKey(0)
    k1, k2, k3, k4 = jax.random.split(key, 4)
    coef = jax.random.normal(k1, (B, K), dtype=jnp.float32)
    mu = jax.random.normal(k2, (B, K, T, 2), dtype=jnp.float32)
    ln_var = 0.5 * jax.random.normal(k3, (B, K, T, 2), dtype=jnp.float32)
    gt = jax.random.normal(k4, (B, T, 2), dtype=jnp.float32)

    loss = jax.block_until_ready(gmm_trajectory_loss(coef, mu, ln_var, gt))
    ref = jax.block_until_ready(_reference_loss(coef, mu, ln_var, gt))

    # Exact softmax division + LSE log-softmax: only f32 rounding / reduction
    # order differences remain, so the tolerance is tight again.
    assert jnp.allclose(loss, ref, rtol=1e-5, atol=1e-5), (loss, ref)
    print("KERNEL_OK")
</pallas_src>

<mosaic_0001>
module attributes {stable_mosaic.version = 11 : i64} {
  func.func @_gmm_loss_kernel(%arg0: memref<2x4xf32, #tpu.memory_space<vmem>>, %arg1: memref<2x4x16xf32, #tpu.memory_space<vmem>>, %arg2: memref<2x4x16xf32, #tpu.memory_space<vmem>>, %arg3: memref<2x16xf32, #tpu.memory_space<vmem>>, %arg4: memref<1x1xf32, #tpu.memory_space<vmem>>) attributes {dimension_semantics = [], scalar_prefetch = 0 : i64, scratch_operands = 0 : i64, tpu.core_type = #tpu.core_type<tc>} {
    %c0 = arith.constant 0 : index
    %c0_0 = arith.constant 0 : index
    %0 = vector.load %arg0[%c0, %c0_0] : memref<2x4xf32, #tpu.memory_space<vmem>>, vector<2x4xf32>
    %c0_1 = arith.constant 0 : index
    %c0_2 = arith.constant 0 : index
    %c0_3 = arith.constant 0 : index
    %1 = vector.load %arg1[%c0_1, %c0_2, %c0_3] : memref<2x4x16xf32, #tpu.memory_space<vmem>>, vector<2x4x16xf32>
    %c0_4 = arith.constant 0 : index
    %c0_5 = arith.constant 0 : index
    %c0_6 = arith.constant 0 : index
    %2 = vector.load %arg2[%c0_4, %c0_5, %c0_6] : memref<2x4x16xf32, #tpu.memory_space<vmem>>, vector<2x4x16xf32>
    %c0_7 = arith.constant 0 : index
    %c0_8 = arith.constant 0 : index
    %3 = vector.load %arg3[%c0_7, %c0_8] : memref<2x16xf32, #tpu.memory_space<vmem>>, vector<2x16xf32>
    %4 = vector.shape_cast %3 : vector<2x16xf32> to vector<2x1x16xf32>
    %5 = vector.broadcast %4 : vector<2x1x16xf32> to vector<2x4x16xf32>
    %6 = arith.subf %5, %1 : vector<2x4x16xf32>
    %7 = arith.mulf %6, %6 : vector<2x4x16xf32>
    %c15_i32 = arith.constant 15 : i32
    %8 = tpu.dynamic_rotate %7 by %c15_i32 dim 2 : vector<2x4x16xf32>, i32 -> vector<2x4x16xf32>
    %c1_i32 = arith.constant 1 : i32
    %9 = tpu.dynamic_rotate %7 by %c1_i32 dim 2 : vector<2x4x16xf32>, i32 -> vector<2x4x16xf32>
    %10 = tpu.iota {dimensions = array<i32: 2>} : vector<2x4x16xi32>
    %c1_i32_9 = arith.constant 1 : i32
    %11 = vector.broadcast %c1_i32_9 : i32 to vector<2x4x16xi32>
    %12 = arith.andi %10, %11 : vector<2x4x16xi32>
    %c0_i32 = arith.constant 0 : i32
    %13 = vector.broadcast %c0_i32 : i32 to vector<2x4x16xi32>
    %14 = arith.cmpi eq, %12, %13 : vector<2x4x16xi32>
    %15 = arith.select %14, %8, %9 : vector<2x4x16xi1>, vector<2x4x16xf32>
    %16 = arith.addf %7, %15 : vector<2x4x16xf32>
    %cst = arith.constant -4.350000e+01 : f32
    %cst_10 = arith.constant 4.350000e+01 : f32
    %17 = vector.broadcast %cst : f32 to vector<2x4x16xf32>
    %18 = arith.maximumf %17, %2 : vector<2x4x16xf32>
    %19 = vector.broadcast %cst_10 : f32 to vector<2x4x16xf32>
    %20 = arith.minimumf %19, %18 : vector<2x4x16xf32>
    %cst_11 = arith.constant 0.000000e+00 : f32
    %21 = vector.broadcast %cst_11 : f32 to vector<2x4x16xf32>
    %22 = arith.subf %21, %20 : vector<2x4x16xf32>
    %23 = math.exp %22 : vector<2x4x16xf32>
    %24 = arith.mulf %16, %23 : vector<2x4x16xf32>
    %cst_12 = arith.constant 1.83787704 : f32
    %25 = vector.broadcast %cst_12 : f32 to vector<2x4x16xf32>
    %26 = arith.addf %25, %20 : vector<2x4x16xf32>
    %27 = arith.addf %24, %26 : vector<2x4x16xf32>
    %cst_13 = arith.constant 5.000000e-01 : f32
    %28 = vector.broadcast %cst_13 : f32 to vector<2x4x16xf32>
    %29 = arith.mulf %28, %27 : vector<2x4x16xf32>
    %cst_14 = arith.constant dense<0.000000e+00> : vector<2x4xf32>
    %30 = vector.multi_reduction <add>, %29, %cst_14 [2] : vector<2x4x16xf32> to vector<2x4xf32>
    %cst_15 = arith.constant dense<0xFF800000> : vector<2xf32>
    %31 = vector.multi_reduction <maximumf>, %0, %cst_15 [1] : vector<2x4xf32> to vector<2xf32>
    %32 = vector.shape_cast %31 : vector<2xf32> to vector<2x1xf32>
    %33 = vector.broadcast %32 : vector<2x1xf32> to vector<2x4xf32>
    %34 = arith.subf %0, %33 : vector<2x4xf32>
    %35 = math.exp %34 : vector<2x4xf32>
    %cst_16 = arith.constant dense<0.000000e+00> : vector<2xf32>
    %36 = vector.multi_reduction <add>, %35, %cst_16 [1] : vector<2x4xf32> to vector<2xf32>
    %37 = vector.shape_cast %36 : vector<2xf32> to vector<2x1xf32>
    %38 = vector.broadcast %37 : vector<2x1xf32> to vector<2x4xf32>
    %39 = arith.divf %35, %38 : vector<2x4xf32>
    %40 = math.log %37 : vector<2x1xf32>
    %41 = vector.broadcast %40 : vector<2x1xf32> to vector<2x4xf32>
    %42 = arith.subf %34, %41 : vector<2x4xf32>
    %cst_17 = arith.constant 5.000000e-01 : f32
    %43 = vector.broadcast %cst_17 : f32 to vector<2x4xf32>
    %44 = arith.mulf %43, %42 : vector<2x4xf32>
    %45 = arith.addf %30, %44 : vector<2x4xf32>
    %46 = arith.mulf %39, %45 : vector<2x4xf32>
    %47 = vector.shape_cast %46 : vector<2x4xf32> to vector<1x2x4xf32>
    %cst_18 = arith.constant dense<0.000000e+00> : vector<1xf32>
    %48 = vector.multi_reduction <add>, %47, %cst_18 [1, 2] : vector<1x2x4xf32> to vector<1xf32>
    %49 = vector.shape_cast %48 : vector<1xf32> to vector<1x1x1xf32>
    %50 = vector.extract %49[0, 0, 0] : f32 from vector<1x1x1xf32>
    %cst_19 = arith.constant 1.000000e+00 : f32
    %51 = vector.broadcast %cst_19 : f32 to vector<1x1xf32>
    %52 = vector.broadcast %50 : f32 to vector<1x1xf32>
    %53 = arith.mulf %52, %51 : vector<1x1xf32>
    %c0_20 = arith.constant 0 : index
    %c0_21 = arith.constant 0 : index
    %54 = vector.load %arg4[%c0_20, %c0_21] : memref<1x1xf32, #tpu.memory_space<vmem>>, vector<1x1xf32>
    tpu.vector_store %arg4[%c0_20, %c0_21], %53 {strides = array<i32>} : memref<1x1xf32, #tpu.memory_space<vmem>>, vector<1x1xf32>,
    return
  }
}

</mosaic_0001>

<llo_original>
// kernel: gmm_trajectory_loss.1
$region0: #{gmm_trajectory_loss.1}
  #allocation0 [shape = 'u32[]', space=smem, size = 0x4, offset = 0x4, fixed_abs, tag = 'smem constant byte address 0x4 - core index']
  #allocation1 [shape = 'u32[144,128]{1,0:T(1,128)}', space=vmem, size = 0x12000, scoped, tag = 'internal scratch']
  %s0 = inlined_call_operand.vmem [shape: f32[2,4], index: 0, kind: input, shape index: {}]
  %s1 = inlined_call_operand.vmem [shape: f32[2,4,16], index: 1, kind: input, shape index: {}]
  %s2 = inlined_call_operand.vmem [shape: f32[2,4,16], index: 2, kind: input, shape index: {}]
  %s3 = inlined_call_operand.vmem [shape: f32[2,16], index: 3, kind: input, shape index: {}]
  %s4 = inlined_call_operand.hbm [shape: f32[1,1], index: 4, kind: output, shape index: {}]
  %s5 = sld [smem:[#allocation0]]
  $region26: #{gmm_trajectory_loss.1} parent=0
    _
  %s7 = ssub.s32 1, %s5
  %s8 = scalar_select 0, %s7, %s5
  $region1: #{gmm_trajectory_loss.1} parent=0
    #allocation2 [shape = 'u8[512]{0}', space=vmem, size = 0x400, scoped, tag = 'output window, operand 0, single buffered']
    #allocation3 [shape = 's32[1]{0}', space=sflag, size = 0x4, scoped, tag = 'scoped memory for gmm_trajectory_loss.1']
    %9 = vsyncpa [#allocation3], 0
    // Predicated region
    $region2: #{gmm_trajectory_loss.1} parent=1 // pred_check
      _
    $region3: #{gmm_trajectory_loss.1} parent=1 // pred_check_branch
      %11 = sbr.rel (0) target = $region5
    $region4: #{gmm_trajectory_loss.1} parent=1 // pred_region
      _
    $region5: #{gmm_trajectory_loss.1} parent=1 // pred_fallthru
      _
    // Predicated region
    $region6: #{gmm_trajectory_loss.1} parent=1 // pred_check
      _
    $region7: #{gmm_trajectory_loss.1} parent=1 // pred_check_branch
      %13 = sbr.rel (0) target = $region9
    $region8: #{gmm_trajectory_loss.1} parent=1 // pred_region
      _
    $region9: #{gmm_trajectory_loss.1} parent=1 // pred_fallthru
      _
    // Predicated region
    $region10: #{gmm_trajectory_loss.1} parent=1 // pred_check
      _
    $region11: #{gmm_trajectory_loss.1} parent=1 // pred_check_branch
      %15 = sbr.rel (0) target = $region13
    $region12: #{gmm_trajectory_loss.1} parent=1 // pred_region
      _
    $region13: #{gmm_trajectory_loss.1} parent=1 // pred_fallthru
      _
    // Predicated region
    $region14: #{gmm_trajectory_loss.1} parent=1 // pred_check
      _
    $region15: #{gmm_trajectory_loss.1} parent=1 // pred_check_branch
      %17 = sbr.rel (0) target = $region17
    $region16: #{gmm_trajectory_loss.1} parent=1 // pred_region
      _
    $region17: #{gmm_trajectory_loss.1} parent=1 // pred_fallthru
      _
    %v18 = vld [vmem:[%s0] sm:$0x3]
    %v19 = vld [vmem:[%s1] sm:$0xf]
    %v20 = vld [vmem:[%s1 + $0x4] sm:$0xf]
    %v21 = vld [vmem:[%s2] sm:$0xf]
    %v22 = vld [vmem:[%s2 + $0x4] sm:$0xf]
    %v23 = vld [vmem:[%s3] sm:$0x3]
    %v26 = vunpack.c.l.s4 1966171168
    %v27 = vunpack.c.0.s8 %v26
    %v28 = vlaneseq
    %v29 = vshrl.u32 %v28, 7
    %v30 = vsub.s32 %v27, %v29
    %v31 = vrot.slane %v23, %v30
    %v32 = vcombine.high %v31, %v31
    %v34 = vunpack.c.l.s4 1966171168
    %v35 = vunpack.c.0.s8 %v34
    %v36 = vlaneseq
    %v37 = vshrl.u32 %v36, 7
    %v38 = vsub.s32 %v35, %v37
    %v39 = vrot.slane %v31, %v38
    %v41 = vunpack.c.l.s4 1966171168
    %v42 = vunpack.c.0.s8 %v41
    %v43 = vlaneseq
    %v44 = vshrl.u32 %v43, 7
    %v45 = vsub.s32 %v42, %v44
    %v46 = vrot.slane %v32, %v45
    %v47 = vlaneseq
    %v48 = vshrl.u32 %v47, 7
    %v49 = vsub.s32 0, %v48
    %v50 = vrot.slane %v39, %v49
    %v51 = vlaneseq
    %v52 = vshrl.u32 %v51, 7
    %v53 = vsub.s32 0, %v52
    %v54 = vrot.slane %v46, %v53
    %v57 = vsub.f32 %v50, %v19
    %v58 = vsub.f32 %v54, %v20
    %v59 = vmul.f32 %v57, %v57
    %v60 = vmul.f32 %v58, %v58
    %vm61 = vcmask 1047680
    %62 = vrot.lane.b32.xlu0 %v59, 16
    %v63 = vpop.permute.xlu0 %62
    %v64 = vsel %vm61, %v63, %v59
    %65 = vrot.lane.b32.xlu0 %v60, 16
    %v66 = vpop.permute.xlu0 %65
    %v67 = vsel %vm61, %v66, %v60
    %68 = vrot.lane.b32.xlu0 %v64, 16
    %v69 = vpop.permute.xlu0 %68
    %70 = vrot.lane.b32.xlu0 %v67, 16
    %v71 = vpop.permute.xlu0 %70
    %v72 = vsel %vm61, %v69, %v59
    %v73 = vsel %vm61, %v71, %v60
    %v74 = vlaneseq
    %v75 = vand.u32 %v74, 127
    %v76 = vand.u32 %v75, 1
    %vm77 = vcmp.eq.s32.totalorder %v76, 0
    %80 = vrot.lane.b32.xlu0 %v72, 127
    %v81 = vpop.permute.xlu0 %80
    %82 = vrot.lane.b32.xlu0 %v73, 127
    %v83 = vpop.permute.xlu0 %82
    %86 = vrot.lane.b32.xlu0 %v72, 113
    %v87 = vpop.permute.xlu0 %86
    %88 = vrot.lane.b32.xlu0 %v73, 113
    %v89 = vpop.permute.xlu0 %88
    %v92 = vsel %vm77, %v81, %v87
    %v93 = vsel %vm77, %v83, %v89
    %v94 = vadd.f32 %v59, %v92
    %v95 = vadd.f32 %v60, %v93
    %v96 = vmax.f32 %v21, -43.5
    %v97 = vmax.f32 %v22, -43.5
    %v98 = vmin.f32 %v96, 43.5
    %v99 = vmin.f32 %v97, 43.5
    %v100 = vsub.f32 0.0, %v98
    %v101 = vsub.f32 0.0, %v99
    %v102 = vmul.f32 %v100, 1.442695
    %v103 = vpow.pop %v102
    %v104 = vmul.f32 %v101, 1.442695
    %v105 = vpow.pop %v104
    %v106 = vmul.f32 %v94, %v103
    %v107 = vmul.f32 %v95, %v105
    %v108 = vadd.f32 %v98, 1.837877
    %v109 = vadd.f32 %v99, 1.837877
    %v110 = vadd.f32 %v106, %v108
    %v111 = vadd.f32 %v107, %v109
    %v112 = vmul.f32 %v110, 0.5
    %v113 = vmul.f32 %v111, 0.5
    %vm114 = vcmask 125952
    %v115 = vsel %vm114, %v112, 0.0
    %116 = vadd.xlane.f32.xlu0 %v115
    %v117 = vpop.xlane.xlu0 %116
    %v118 = vsel %vm114, %v113, 0.0
    %119 = vadd.xlane.f32.xlu0 %v118
    %v120 = vpop.xlane.xlu0 %119
    %vm121 = vcmask 25600
    %v122 = vsel %vm121, %v18, -inf
    %123 = vmax.xlane.f32.xlu0 %v122
    %v124 = vpop.xlane.xlu0 %123
    %v125 = vsub.f32 %v18, %v124
    %v126 = vmul.f32 %v125, 1.442695
    %v127 = vpow.pop %v126
    %v128 = vsel %vm121, %v127, 0.0
    %129 = vadd.xlane.f32.xlu0 %v128
    %v130 = vpop.xlane.xlu0 %129
    %v131 = vrcp.pop %v130
    %v132 = vmul.f32 %v127, %v131
    %v133 = vlog2.pop %v130
    %v134 = vmul.f32 %v133, 0.6931472
    %v135 = vsub.f32 %v125, %v134
    %v136 = vmul.f32 %v135, 0.5
    %v138 = vlaneseq
    %v139 = vshrl.u32 %v138, 7
    %v140 = vsub.s32 0, %v139
    %v141 = vrot.slane %v136, %v140
    %143 = vbcast.lane.b32.xlu0 %v141, 256
    %v144 = vpop.permute.xlu0 %143
    %v145 = vlaneseq
    %v146 = vshrl.u32 %v145, 7
    %v147 = vsub.s32 1, %v146
    %v148 = vrot.slane %v136, %v147
    %150 = vbcast.lane.b32.xlu0 %v148, 256
    %v151 = vpop.permute.xlu0 %150
    %v154 = vadd.f32 %v117, %v144
    %v155 = vadd.f32 %v120, %v151
    %158 = vset.pattern.permute.xlu0 0
    %159 = vperm.xlu0 %158, %v154
    %v160 = vpop.permute.xlu0 %159
    %161 = vset.pattern.permute.xlu0 0
    %162 = vperm.xlu0 %161, %v155
    %v163 = vpop.permute.xlu0 %162
    %v164 = vlaneseq
    %v165 = vshrl.u32 %v164, 7
    %v166 = vsub.s32 %v75, %v165
    %v167 = vrot.slane %v160, %v166
    %v168 = vlaneseq
    %v169 = vshrl.u32 %v168, 7
    %v170 = vsub.s32 %v75, %v169
    %v171 = vrot.slane %v163, %v170
    %vm172 = vcmask 1041409
    %v173 = vsel %vm172, %v171, %v167
    %v175 = vmul.f32 %v132, %v173
    %v176 = vsel %vm121, %v175, 0.0
    %177 = vadd.xlane.f32.xlu0 %v176
    %v178 = vpop.xlane.xlu0 %177
    %v179 = vrot.slane %v178, 4
    %v180 = vadd.f32 %v178, %v179
    %v181 = vrot.slane %v180, 2
    %v182 = vadd.f32 %v180, %v181
    %v183 = vrot.slane %v182, 1
    %v184 = vadd.f32 %v182, %v183
    %s185 = vtos %v184
    %v186 = vstv %s185
    %vm187 = vcmask 0
    %188 = vst.msk [vmem:[#allocation2] sm:$0x1] %vm187, %v186
    // Predicated region
    $region18: #{gmm_trajectory_loss.1} parent=1 // pred_check
      _
    $region19: #{gmm_trajectory_loss.1} parent=1 // pred_check_branch
      %190 = sbr.rel (0) target = $region21
    $region20: #{gmm_trajectory_loss.1} parent=1 // pred_region
      %s192 = ssub.s32 16, 16
      %193 = vsyncadd [#allocation3], %s192
      %s195 = sshll.u32 [#allocation2], 4
      %s196 = int_to_ptr.vmem [resolvable:$true] %s195
      %198 = dma.vmem_to_hbm [thread:$0]  %s196, 16, %s4, [#allocation3]
    $region21: #{gmm_trajectory_loss.1} parent=1 // pred_fallthru
      _
    // Predicated region
    $region22: #{gmm_trajectory_loss.1} parent=1 // pred_check
      _
    $region23: #{gmm_trajectory_loss.1} parent=1 // pred_check_branch
      %200 = sbr.rel (0) target = $region25
    $region24: #{gmm_trajectory_loss.1} parent=1 // pred_region
      %201 = dma.done [#allocation3], 16
    $region25: #{gmm_trajectory_loss.1} parent=1 // pred_fallthru
      _
    %202 = vsyncpa [#allocation3], 1

</llo_original>
